<compile_context>
chip_gen: v6e
topology: v6e:2x2x1
jax: 0.10.0
libtpu: 0.0.40
codegen_flags: <defaults>
</compile_context>

<pallas_src>
import functools

import jax
import jax.numpy as jnp
from jax.experimental import pallas as pl
from jax.experimental.pallas import tpu as pltpu

_MIB = 1024 * 1024


def _ordinal_loss_kernel(pred_ref, targ_ref, out_ref, *,
                         od_weight, oc_weight, smooth):
    """One grid step: a (TB, TH, W) block -> 3 partial sums (wMSE, |dx|, |dy|).

    out_ref is a (1, 1, 8, 128) f32 tile; lanes 0/1/2 hold the three partial
    sums (lane-dense, unmasked full-tile store).
    """
    p = pred_ref[...].astype(jnp.float32)   # (TB, TH, TW)
    t_raw = targ_ref[...]                   # native dtype (bf16 ok on v6e/v7x)

    # Region weighting fused into one select chain + one multiply.
    # (Keep the t < 0.6 check to preserve exact PyTorch semantics for targets
    #  outside {0, 0.5, 1.0}; comparisons on the raw dtype are exact for the
    #  nominal ordinal-mask values.)
    od = jnp.logical_and(t_raw > 0.4, t_raw < 0.6)
    weight = jnp.where(t_raw > 0.9, jnp.float32(oc_weight),
                       jnp.where(od, jnp.float32(od_weight), jnp.float32(1.0)))

    t = t_raw.astype(jnp.float32)
    diff = p - t
    s_w = jnp.sum(diff * diff * weight)

    # Smoothness terms: XLU rolls + small broadcastable masks (no full-block
    # int32 temporaries). Work is elided at trace time when smooth == 0.
    if smooth > 0:
        _, th, tw = p.shape
        if tw > 1:
            col = jax.lax.broadcasted_iota(jnp.int32, (1, 1, tw), 2)
            # roll by tw-1 == shift by -1: p_x[..., i] = p[..., (i+1) % tw]
            p_x = pltpu.roll(p, shift=tw - 1, axis=2)
            s_dx = jnp.sum(jnp.where(col < tw - 1, jnp.abs(p_x - p), 0.0))
        else:
            s_dx = jnp.float32(0.0)
        if th > 1:
            row = jax.lax.broadcasted_iota(jnp.int32, (1, th, 1), 1)
            p_y = pltpu.roll(p, shift=th - 1, axis=1)
            s_dy = jnp.sum(jnp.where(row < th - 1, jnp.abs(p_y - p), 0.0))
        else:
            s_dy = jnp.float32(0.0)
    else:
        s_dx = jnp.float32(0.0)
        s_dy = jnp.float32(0.0)

    # Pack the three scalars into a lane-dense output tile (lanes 0/1/2).
    lane = jax.lax.broadcasted_iota(jnp.int32, out_ref.shape, 3)
    part = jnp.where(lane == 0, s_w, jnp.float32(0.0))
    part = jnp.where(lane == 1, s_dx, part)
    part = jnp.where(lane == 2, s_dy, part)
    out_ref[...] = part


def _vmem_capacity_bytes():
    """Per-generation VMEM capacity; conservative fallback if query fails."""
    try:
        return int(pltpu.get_tpu_info().vmem_capacity_bytes)
    except Exception:
        return 64 * _MIB   # v7x per-TC physical VMEM (smallest of the three)


def _largest_divisor_leq(n, k):
    k = max(1, min(k, n))
    while k > 1 and n % k != 0:
        k -= 1
    return k


def _pick_row_block(h, max_rows):
    """Largest th <= max_rows with th == h, or th % 8 == 0 and h % th == 0."""
    if h <= max_rows:
        return h
    th = (min(max_rows, h) // 8) * 8
    while th >= 8:
        if h % th == 0:
            return th
        th -= 8
    # TODO(synk): no clean multiple-of-8 row split exists for this H; fall back
    # to the full image and rely on the raised vmem_limit_bytes.
    return h


def ordinal_loss(pred, target, od_weight=1.5, oc_weight=2.0, smooth=0.1):
    """JAX/Pallas equivalent of OrdinalLoss.forward.

    pred:   (B, 1, H, W), (B, C, H, W) or (B, H, W)
    target: matching layout; (B, H, W, 1) NHWC also accepted.
    returns scalar float32 loss.
    """
    smooth = float(smooth)

    # --- shape normalization (metadata-only; mirrors the PyTorch module) ---
    if pred.ndim == 4:
        pred = pred[:, 0] if pred.shape[1] == 1 else pred.reshape(
            (-1,) + pred.shape[-2:])
    if target.ndim == 4:
        if target.shape[-1] == 1:
            target = target[..., 0]                      # NHWC, C == 1
        elif target.shape[1] == 1:
            target = target[:, 0]                        # NCHW, C == 1
        else:
            target = target.reshape((-1,) + target.shape[-2:])
    assert pred.shape == target.shape, (pred.shape, target.shape)
    B, H, W = pred.shape

    # --- block sizing: budget covers DMA double-buffers AND f32 temporaries ---
    vmem_cap = _vmem_capacity_bytes()
    # A few MiB of block already reaches ~85% of HBM roofline; stay well under
    # the scoped limit on every generation (v5e 16 MiB default, v7x 64 MiB phys).
    target_vmem = max(min(vmem_cap // 8, 16 * _MIB), 2 * _MIB)
    temps_f32 = 8 if smooth > 0 else 5            # live full-block f32 temps
    in_bytes_per_elem = pred.dtype.itemsize + target.dtype.itemsize
    cost_per_elem = 2 * in_bytes_per_elem + 4 * temps_f32   # 2x = double buffer
    max_block_elems = max(target_vmem // cost_per_elem, 8 * W)

    if H * W <= max_block_elems:
        tb_max = max(1, min(B, max_block_elems // (H * W)))
        if B >= 2:
            tb_max = min(tb_max, -(-B // 2))   # >= 2 grid steps (v7x: 2 TCs)
        tb = _largest_divisor_leq(B, tb_max)   # no batch padding needed
        th = H
        if B == 1 and H % 16 == 0:             # single image: still 2 blocks
            th = H // 2
    else:
        tb = 1                                  # one image exceeds the budget
        th = _pick_row_block(H, max(max_block_elems // W, 8))

    nb = B // tb
    nr = -(-H // th)   # th divides H in every split path, so this is exact

    block_elems = tb * th * W
    vmem_estimate = (2 * block_elems * in_bytes_per_elem       # dbl-buffered in
                     + temps_f32 * block_elems * 4             # f32 temps
                     + 2 * 8 * 128 * 4)                        # dbl-buffered out
    vmem_limit = int(min(max(2 * vmem_estimate + _MIB, 8 * _MIB), vmem_cap))

    kernel = functools.partial(
        _ordinal_loss_kernel,
        od_weight=float(od_weight),
        oc_weight=float(oc_weight),
        smooth=smooth,
    )

    partials = pl.pallas_call(
        kernel,
        out_shape=jax.ShapeDtypeStruct((nb, nr, 8, 128), jnp.float32),
        grid=(nb, nr),
        in_specs=[
            pl.BlockSpec((tb, th, W), lambda i, j: (i, j, 0)),
            pl.BlockSpec((tb, th, W), lambda i, j: (i, j, 0)),
        ],
        out_specs=pl.BlockSpec((1, 1, 8, 128), lambda i, j: (i, j, 0, 0)),
        compiler_params=pltpu.CompilerParams(
            dimension_semantics=("parallel", "parallel"),
            vmem_limit_bytes=vmem_limit),
    )(pred, target)

    # Final (tiny) reduction + normalization in plain JAX.
    sums = jnp.sum(partials[:, :, 0, :3], axis=(0, 1))   # (3,)
    out = sums[0] / jnp.float32(B * H * W)
    if smooth > 0:
        dx_sum = sums[1]
        dy_sum = sums[2]
        if nr > 1:
            # dy pairs straddling row-block seams (rows k*th-1 / k*th):
            # tiny strided slices, handled outside the kernel.
            hi = pred[:, th:(nr - 1) * th + 1:th, :].astype(jnp.float32)
            lo = pred[:, th - 1:(nr - 1) * th:th, :].astype(jnp.float32)
            dy_sum = dy_sum + jnp.sum(jnp.abs(lo - hi))
        # NOTE: for H == 1 or W == 1 the corresponding term contributes 0,
        # whereas PyTorch's mean over an empty tensor is NaN (intentional).
        n_dx = max(B * H * (W - 1), 1)
        n_dy = max(B * (H - 1) * W, 1)
        out = out + jnp.float32(smooth) * (dx_sum / jnp.float32(n_dx)
                                           + dy_sum / jnp.float32(n_dy))
    return out


def _ordinal_loss_ref(pred, target, od_weight=1.5, oc_weight=2.0, smooth=0.1):
    """Pure-JAX reference mirroring the PyTorch module (correctness check)."""
    pred = pred.astype(jnp.float32)
    target = target.astype(jnp.float32)
    if pred.ndim == 4 and pred.shape[1] == 1:
        pred = pred[:, 0]
    if target.ndim == 4 and target.shape[-1] == 1:
        target = jnp.transpose(target, (0, 3, 1, 2))
    if target.ndim == 4 and target.shape[1] == 1:
        target = target[:, 0]
    loss = (pred - target) ** 2
    od = (target > 0.4) & (target < 0.6)
    oc = target > 0.9
    w = jnp.where(od, loss * od_weight, loss)
    w = jnp.where(oc, w * oc_weight, w)
    out = jnp.mean(w)
    if smooth > 0:
        dx = jnp.abs(pred[..., :-1] - pred[..., 1:])
        dy = jnp.abs(pred[..., :-1, :] - pred[..., 1:, :])
        out = out + smooth * (jnp.mean(dx) + jnp.mean(dy))
    return out


if __name__ == "__main__":
    key = jax.random.PRNGKey(0)
    k_pred, k_targ, k_p2, k_t2, k_p3, k_t3 = jax.random.split(key, 6)

    # 1) pred NCHW f32, target NHWC — both layout branches, smooth on.
    B, C, H, W = 2, 1, 16, 16
    pred = jax.random.uniform(k_pred, (B, C, H, W), dtype=jnp.float32)
    target = 0.5 * jax.random.randint(k_targ, (B, H, W, 1), 0, 3).astype(jnp.float32)
    out = jax.block_until_ready(ordinal_loss(pred, target))
    ref = jax.block_until_ready(_ordinal_loss_ref(pred, target))
    assert jnp.allclose(out, ref, rtol=1e-5, atol=1e-5), (out, ref)

    # 2) bf16 pred + bf16 target (half-width HBM streams, in-kernel f32 math).
    pred_bf, targ_bf = pred.astype(jnp.bfloat16), target.astype(jnp.bfloat16)
    out_bf = jax.block_until_ready(ordinal_loss(pred_bf, targ_bf))
    ref_bf = jax.block_until_ready(_ordinal_loss_ref(pred_bf, targ_bf))
    assert jnp.allclose(out_bf, ref_bf, rtol=1e-5, atol=1e-5), (out_bf, ref_bf)

    # 3) smooth == 0 path (dx/dy work elided at trace time).
    out_ns = jax.block_until_ready(ordinal_loss(pred, target, smooth=0.0))
    ref_ns = jax.block_until_ready(_ordinal_loss_ref(pred, target, smooth=0.0))
    assert jnp.allclose(out_ns, ref_ns, rtol=1e-5, atol=1e-5), (out_ns, ref_ns)

    # 4) B == 1 with row-split grid (nr == 2) -> exercises the dy seam pass.
    pred1 = jax.random.uniform(k_p2, (1, 1, 32, 16), dtype=jnp.float32)
    targ1 = 0.5 * jax.random.randint(k_t2, (1, 1, 32, 16), 0, 3).astype(jnp.float32)
    out1 = jax.block_until_ready(ordinal_loss(pred1, targ1))
    ref1 = jax.block_until_ready(_ordinal_loss_ref(pred1, targ1))
    assert jnp.allclose(out1, ref1, rtol=1e-5, atol=1e-5), (out1, ref1)

    # 5) odd batch (divisor-based batch blocks, no padding).
    pred3 = jax.random.uniform(k_p3, (3, 1, 16, 16), dtype=jnp.float32)
    targ3 = 0.5 * jax.random.randint(k_t3, (3, 16, 16, 1), 0, 3).astype(jnp.float32)
    out3 = jax.block_until_ready(ordinal_loss(pred3, targ3))
    ref3 = jax.block_until_ready(_ordinal_loss_ref(pred3, targ3))
    assert jnp.allclose(out3, ref3, rtol=1e-5, atol=1e-5), (out3, ref3)

    print("KERNEL_OK")
</pallas_src>

<mosaic_0001>
module attributes {stable_mosaic.version = 11 : i64} {
  func.func @_ordinal_loss_kernel(%arg0: i32, %arg1: i32, %arg2: memref<1x16x16xf32, #tpu.memory_space<vmem>>, %arg3: memref<1x16x16xf32, #tpu.memory_space<vmem>>, %arg4: memref<1x1x8x128xf32, #tpu.memory_space<vmem>>) attributes {dimension_semantics = [#tpu.dimension_semantics<parallel>, #tpu.dimension_semantics<parallel>], iteration_bounds = array<i64: 2, 1>, scalar_prefetch = 0 : i64, scratch_operands = 0 : i64, tpu.core_type = #tpu.core_type<tc>, window_params = [{transform_indices = @transform_0, window_bounds = array<i64: 1, 16, 16>}, {transform_indices = @transform_1, window_bounds = array<i64: 1, 16, 16>}, {transform_indices = @transform_2, window_bounds = array<i64: 1, 1, 8, 128>}]} {
    %c0 = arith.constant 0 : index
    %c0_0 = arith.constant 0 : index
    %c0_1 = arith.constant 0 : index
    %0 = vector.load %arg2[%c0, %c0_0, %c0_1] : memref<1x16x16xf32, #tpu.memory_space<vmem>>, vector<1x16x16xf32>
    %c0_2 = arith.constant 0 : index
    %c0_3 = arith.constant 0 : index
    %c0_4 = arith.constant 0 : index
    %1 = vector.load %arg3[%c0_2, %c0_3, %c0_4] : memref<1x16x16xf32, #tpu.memory_space<vmem>>, vector<1x16x16xf32>
    %cst = arith.constant 4.000000e-01 : f32
    %2 = vector.broadcast %cst : f32 to vector<1x16x16xf32>
    %3 = arith.cmpf ogt, %1, %2 : vector<1x16x16xf32>
    %cst_5 = arith.constant 6.000000e-01 : f32
    %4 = vector.broadcast %cst_5 : f32 to vector<1x16x16xf32>
    %5 = arith.cmpf olt, %1, %4 : vector<1x16x16xf32>
    %6 = arith.andi %3, %5 : vector<1x16x16xi1>
    %cst_6 = arith.constant 0.899999976 : f32
    %7 = vector.broadcast %cst_6 : f32 to vector<1x16x16xf32>
    %8 = arith.cmpf ogt, %1, %7 : vector<1x16x16xf32>
    %cst_7 = arith.constant 1.500000e+00 : f32
    %cst_8 = arith.constant 1.000000e+00 : f32
    %9 = vector.broadcast %cst_7 : f32 to vector<1x16x16xf32>
    %10 = vector.broadcast %cst_8 : f32 to vector<1x16x16xf32>
    %11 = arith.select %6, %9, %10 : vector<1x16x16xi1>, vector<1x16x16xf32>
    %cst_9 = arith.constant 2.000000e+00 : f32
    %12 = vector.broadcast %cst_9 : f32 to vector<1x16x16xf32>
    %13 = arith.select %8, %12, %11 : vector<1x16x16xi1>, vector<1x16x16xf32>
    %14 = arith.subf %0, %1 : vector<1x16x16xf32>
    %15 = arith.mulf %14, %14 : vector<1x16x16xf32>
    %16 = arith.mulf %15, %13 : vector<1x16x16xf32>
    %17 = vector.shape_cast %16 : vector<1x16x16xf32> to vector<1x1x16x16xf32>
    %cst_10 = arith.constant dense<0.000000e+00> : vector<1xf32>
    %18 = vector.multi_reduction <add>, %17, %cst_10 [1, 2, 3] : vector<1x1x16x16xf32> to vector<1xf32>
    %19 = vector.shape_cast %18 : vector<1xf32> to vector<1x1x1x1xf32>
    %20 = vector.extract %19[0, 0, 0, 0] : f32 from vector<1x1x1x1xf32>
    %21 = tpu.iota {dimensions = array<i32: 2>} : vector<1x1x16xi32>
    %c15_i32 = arith.constant 15 : i32
    %22 = tpu.dynamic_rotate %0 by %c15_i32 dim 2 : vector<1x16x16xf32>, i32 -> vector<1x16x16xf32>
    %c15_i32_11 = arith.constant 15 : i32
    %23 = vector.broadcast %c15_i32_11 : i32 to vector<1x1x16xi32>
    %24 = arith.cmpi slt, %21, %23 : vector<1x1x16xi32>
    %25 = arith.subf %22, %0 : vector<1x16x16xf32>
    %26 = math.absf %25 : vector<1x16x16xf32>
    %cst_12 = arith.constant 0.000000e+00 : f32
    %27 = vector.shape_cast %24 : vector<1x1x16xi1> to vector<1x1x16xi1>
    %28 = vector.broadcast %27 : vector<1x1x16xi1> to vector<1x16x16xi1>
    %29 = vector.broadcast %cst_12 : f32 to vector<1x16x16xf32>
    %30 = arith.select %28, %26, %29 : vector<1x16x16xi1>, vector<1x16x16xf32>
    %31 = vector.shape_cast %30 : vector<1x16x16xf32> to vector<1x1x16x16xf32>
    %cst_13 = arith.constant dense<0.000000e+00> : vector<1xf32>
    %32 = vector.multi_reduction <add>, %31, %cst_13 [1, 2, 3] : vector<1x1x16x16xf32> to vector<1xf32>
    %33 = vector.shape_cast %32 : vector<1xf32> to vector<1x1x1x1xf32>
    %34 = vector.extract %33[0, 0, 0, 0] : f32 from vector<1x1x1x1xf32>
    %35 = tpu.iota {dimensions = array<i32: 1>} : vector<1x16x1xi32>
    %c15_i32_14 = arith.constant 15 : i32
    %36 = tpu.dynamic_rotate %0 by %c15_i32_14 dim 1 : vector<1x16x16xf32>, i32 -> vector<1x16x16xf32>
    %c15_i32_15 = arith.constant 15 : i32
    %37 = vector.broadcast %c15_i32_15 : i32 to vector<1x16x1xi32>
    %38 = arith.cmpi slt, %35, %37 : vector<1x16x1xi32>
    %39 = arith.subf %36, %0 : vector<1x16x16xf32>
    %40 = math.absf %39 : vector<1x16x16xf32>
    %cst_16 = arith.constant 0.000000e+00 : f32
    %41 = vector.shape_cast %38 : vector<1x16x1xi1> to vector<1x16x1xi1>
    %42 = vector.broadcast %41 : vector<1x16x1xi1> to vector<1x16x16xi1>
    %43 = vector.broadcast %cst_16 : f32 to vector<1x16x16xf32>
    %44 = arith.select %42, %40, %43 : vector<1x16x16xi1>, vector<1x16x16xf32>
    %45 = vector.shape_cast %44 : vector<1x16x16xf32> to vector<1x1x16x16xf32>
    %cst_17 = arith.constant dense<0.000000e+00> : vector<1xf32>
    %46 = vector.multi_reduction <add>, %45, %cst_17 [1, 2, 3] : vector<1x1x16x16xf32> to vector<1xf32>
    %47 = vector.shape_cast %46 : vector<1xf32> to vector<1x1x1x1xf32>
    %48 = vector.extract %47[0, 0, 0, 0] : f32 from vector<1x1x1x1xf32>
    %49 = tpu.iota {dimensions = array<i32: 3>} : vector<1x1x8x128xi32>
    %c0_i32 = arith.constant 0 : i32
    %50 = vector.broadcast %c0_i32 : i32 to vector<1x1x8x128xi32>
    %51 = arith.cmpi eq, %49, %50 : vector<1x1x8x128xi32>
    %cst_18 = arith.constant 0.000000e+00 : f32
    %52 = vector.broadcast %20 : f32 to vector<1x1x8x128xf32>
    %53 = vector.broadcast %cst_18 : f32 to vector<1x1x8x128xf32>
    %54 = arith.select %51, %52, %53 : vector<1x1x8x128xi1>, vector<1x1x8x128xf32>
    %c1_i32 = arith.constant 1 : i32
    %55 = vector.broadcast %c1_i32 : i32 to vector<1x1x8x128xi32>
    %56 = arith.cmpi eq, %49, %55 : vector<1x1x8x128xi32>
    %57 = vector.broadcast %34 : f32 to vector<1x1x8x128xf32>
    %58 = arith.select %56, %57, %54 : vector<1x1x8x128xi1>, vector<1x1x8x128xf32>
    %c2_i32 = arith.constant 2 : i32
    %59 = vector.broadcast %c2_i32 : i32 to vector<1x1x8x128xi32>
    %60 = arith.cmpi eq, %49, %59 : vector<1x1x8x128xi32>
    %61 = vector.broadcast %48 : f32 to vector<1x1x8x128xf32>
    %62 = arith.select %60, %61, %58 : vector<1x1x8x128xi1>, vector<1x1x8x128xf32>
    %c0_19 = arith.constant 0 : index
    %c0_20 = arith.constant 0 : index
    %c0_21 = arith.constant 0 : index
    %c0_22 = arith.constant 0 : index
    %63 = vector.load %arg4[%c0_19, %c0_20, %c0_21, %c0_22] : memref<1x1x8x128xf32, #tpu.memory_space<vmem>>, vector<1x1x8x128xf32>
    tpu.vector_store %arg4[%c0_19, %c0_20, %c0_21, %c0_22], %62 {strides = array<i32>} : memref<1x1x8x128xf32, #tpu.memory_space<vmem>>, vector<1x1x8x128xf32>,
    return
  }
  func.func @transform_0(%arg0: i32, %arg1: i32) -> (i32, i32, i32) {
    %c0_i32 = arith.constant 0 : i32
    %c0_i32_0 = arith.constant 0 : i32
    return %arg0, %arg1, %c0_i32 : i32, i32, i32
  }
  func.func @transform_1(%arg0: i32, %arg1: i32) -> (i32, i32, i32) {
    %c0_i32 = arith.constant 0 : i32
    %c0_i32_0 = arith.constant 0 : i32
    return %arg0, %arg1, %c0_i32 : i32, i32, i32
  }
  func.func @transform_2(%arg0: i32, %arg1: i32) -> (i32, i32, i32, i32) {
    %c0_i32 = arith.constant 0 : i32
    %c0_i32_0 = arith.constant 0 : i32
    %c0_i32_1 = arith.constant 0 : i32
    return %arg0, %arg1, %c0_i32, %c0_i32_0 : i32, i32, i32, i32
  }
}

</mosaic_0001>

<llo_original>
// kernel: tpu_custom_call.1
$region0: #{tpu_custom_call.1}
  #allocation0 [shape = 'u32[]', space=smem, size = 0x4, offset = 0x4, fixed_abs, tag = 'smem constant byte address 0x4 - core index']
  #allocation1 [shape = 'u32[144,128]{1,0:T(1,128)}', space=vmem, size = 0x12000, scoped, tag = 'internal scratch']
  %s0 = inlined_call_operand.hbm [shape: f32[2,16,16], index: 0, kind: input, shape index: {}]
  %s1 = inlined_call_operand.hbm [shape: f32[2,16,16], index: 1, kind: input, shape index: {}]
  %s2 = inlined_call_operand.hbm [shape: f32[2,1,8,128], index: 2, kind: output, shape index: {}]
  %s3 = sld [smem:[#allocation0]]
  $region49: #{tpu_custom_call.1} parent=0
    _
  %s5 = ssub.s32 1, %s3
  %s6 = scalar_select 0, %s5, %s3
  $region1: #{tpu_custom_call.1} parent=0
    #allocation2 [shape = 'u8[16384]{0}', space=vmem, size = 0x4000, scoped, tag = 'input window, operand 0']
    #allocation3 [shape = 's32[2]{0}', space=sflag, size = 0x8, scoped, tag = 'scoped memory for tpu_custom_call.1']
    #allocation4 [shape = 's32[2]{0}', space=sflag, size = 0x8, scoped, tag = 'scoped memory for tpu_custom_call.1']
    #allocation5 [shape = 'u8[16384]{0}', space=vmem, size = 0x4000, scoped, tag = 'input window, operand 1']
    #allocation6 [shape = 's32[2]{0}', space=sflag, size = 0x8, scoped, tag = 'scoped memory for tpu_custom_call.1']
    #allocation7 [shape = 'u8[8192]{0}', space=vmem, size = 0x2000, scoped, tag = 'output window, operand 0']
    %7 = vsyncpa [#allocation3], 0
    %s8 = scalar_lea.sflag [#allocation3], 1
    %9 = vsyncpa %s8, 0
    %10 = vsyncpa [#allocation6], 0
    %s11 = scalar_lea.sflag [#allocation6], 1
    %12 = vsyncpa %s11, 0
    %13 = vsyncpa [#allocation4], 0
    %s14 = scalar_lea.sflag [#allocation4], 1
    %15 = vsyncpa %s14, 0
    loop: start=0, step=1, limit=4
    $region2: #{tpu_custom_call.1} parent=1 // loop_pre_header
      _
    $region3: #{tpu_custom_call.1} parent=1 // loop_header
      %s17 = sphi 0, %s21
      %p18 = scmp.ge.s32.totalorder %s17, 4
      %s24 = sphi 0, %s36
      %s25 = sphi 0, %s32
      %s26 = sphi 0, %s24
      %s27 = sphi 0, %s25
      %s28 = sphi 0, %s26
      %s29 = sphi 0, %s27
      %s41 = sphi 0, %s43
      %s44 = sphi 0, %s41
      %s45 = sphi 0, %s44
      %s61 = sphi 0, %s45
      %s69 = sphi 0, %s71
      %s72 = sphi 0, %s69
      %s73 = sphi 0, %s72
      %s89 = sphi 0, %s73
      %s97 = sphi 0, %s99
      %s100 = sphi 0, %s97
      %s101 = sphi 0, %s100
      %s117 = sphi 0, %s101
    $region4: #{tpu_custom_call.1} parent=1 // loop_header_branch
      %20 = sbr.rel (%p18) target = $region8
    $region5: #{tpu_custom_call.1} parent=1 // loop_body
      %s22 = ssub.s32 %s17, 1
      %s23 = ssub.s32 %s17, 2
      %s30 = sadd.s32 1, %s25
      %p31 = scmp.ge.s32.totalorder %s30, 1
      %s32 = scalar_select %p31, 0, %s30
      %s33 = sadd.s32 1, %s24
      %s34 = scalar_select %p31, %s33, %s24
      %p35 = scmp.ge.s32.totalorder %s34, 2
      %s36 = scalar_select %p35, 0, %s34
      %s37 = ssub.s32 %s24, %s36
      %s38 = ssub.s32 %s25, %s32
      %s39 = sor.u32 %s37, %s38
      %p40 = scmp.eq.s32.totalorder %s39, 0
      %s42 = sadd.s32 %s41, 1
      %s43 = scalar_select %p40, %s41, %s42
      %p46 = pneg %p40
      %p47 = scmp.eq.s32.totalorder %s17, 1
      %p48 = por %p46, %p47
      %p49 = scmp.ne.s32.totalorder %s41, %s44
      %p50 = scmp.eq.s32.totalorder %s17, 0
      %p51 = por %p49, %p50
      %p52 = scmp.ne.s32.totalorder %s41, %s44
      %p53 = scmp.eq.s32.totalorder %s22, 1
      %p54 = por %p52, %p53
      %p55 = scmp.ne.s32.totalorder %s44, %s45
      %p56 = scmp.eq.s32.totalorder %s22, 0
      %p57 = por %p55, %p56
      %p58 = scmp.ne.s32.totalorder %s44, %s45
      %p59 = scmp.eq.s32.totalorder %s23, 1
      %p60 = por %p58, %p59
      %p62 = scmp.ne.s32.totalorder %s45, %s61
      %p63 = scmp.eq.s32.totalorder %s23, 0
      %p64 = por %p62, %p63
      %s65 = ssub.s32 %s24, %s36
      %s66 = ssub.s32 %s25, %s32
      %s67 = sor.u32 %s65, %s66
      %p68 = scmp.eq.s32.totalorder %s67, 0
      %s70 = sadd.s32 %s69, 1
      %s71 = scalar_select %p68, %s69, %s70
      %p74 = pneg %p68
      %p75 = scmp.eq.s32.totalorder %s17, 1
      %p76 = por %p74, %p75
      %p77 = scmp.ne.s32.totalorder %s69, %s72
      %p78 = scmp.eq.s32.totalorder %s17, 0
      %p79 = por %p77, %p78
      %p80 = scmp.ne.s32.totalorder %s69, %s72
      %p81 = scmp.eq.s32.totalorder %s22, 1
      %p82 = por %p80, %p81
      %p83 = scmp.ne.s32.totalorder %s72, %s73
      %p84 = scmp.eq.s32.totalorder %s22, 0
      %p85 = por %p83, %p84
      %p86 = scmp.ne.s32.totalorder %s72, %s73
      %p87 = scmp.eq.s32.totalorder %s23, 1
      %p88 = por %p86, %p87
      %p90 = scmp.ne.s32.totalorder %s73, %s89
      %p91 = scmp.eq.s32.totalorder %s23, 0
      %p92 = por %p90, %p91
      %s93 = ssub.s32 %s24, %s36
      %s94 = ssub.s32 %s25, %s32
      %s95 = sor.u32 %s93, %s94
      %p96 = scmp.eq.s32.totalorder %s95, 0
      %s98 = sadd.s32 %s97, 1
      %s99 = scalar_select %p96, %s97, %s98
      %p102 = pneg %p96
      %p103 = scmp.eq.s32.totalorder %s17, 1
      %p104 = por %p102, %p103
      %p105 = scmp.ne.s32.totalorder %s97, %s100
      %p106 = scmp.eq.s32.totalorder %s17, 0
      %p107 = por %p105, %p106
      %p108 = scmp.ne.s32.totalorder %s97, %s100
      %p109 = scmp.eq.s32.totalorder %s22, 1
      %p110 = por %p108, %p109
      %p111 = scmp.ne.s32.totalorder %s100, %s101
      %p112 = scmp.eq.s32.totalorder %s22, 0
      %p113 = por %p111, %p112
      %p114 = scmp.ne.s32.totalorder %s100, %s101
      %p115 = scmp.eq.s32.totalorder %s23, 1
      %p116 = por %p114, %p115
      %p118 = scmp.ne.s32.totalorder %s101, %s117
      %p119 = scmp.eq.s32.totalorder %s23, 0
      %p120 = por %p118, %p119
      %p121 = scmp.le.s32.totalorder 1, %s17
      %p122 = scmp.lt.s32.totalorder %s17, 3
      %p123 = pnand %p121, %p122
      %p124 = pneg %p123
      // Predicated region
      $region9: #{tpu_custom_call.1} parent=5 // pred_check
        _
      $region10: #{tpu_custom_call.1} parent=5 // pred_check_branch
        %126 = sbr.rel (%p123) target = $region12
      $region11: #{tpu_custom_call.1} parent=5 // pred_region
        %s127 = ssub.s32 %s17, 1
      $region12: #{tpu_custom_call.1} parent=5 // pred_fallthru
        _
      %p128 = scmp.lt.s32.totalorder %s17, 2
      // Predicated region
      $region13: #{tpu_custom_call.1} parent=5 // pred_check
        %p129 = pneg %p128
      $region14: #{tpu_custom_call.1} parent=5 // pred_check_branch
        %131 = sbr.rel (%p129) target = $region16
      $region15: #{tpu_custom_call.1} parent=5 // pred_region
        // Predicated region
        $region17: #{tpu_custom_call.1} parent=15 // pred_check
          %p132 = pneg %p51
        $region18: #{tpu_custom_call.1} parent=15 // pred_check_branch
          %134 = sbr.rel (%p132) target = $region20
        $region19: #{tpu_custom_call.1} parent=15 // pred_region
          %s135 = sand.u32 %s41, 1
          %s136 = scalar_lea.sflag [#allocation3], %s135
          %s137 = sand.u32 %s41, 1
          %s138 = smul.addr %s137, 16
          %s139 = scalar_lea.vmem [#allocation2], %s138
          %s140 = smul.u32 2, %s25
          %s142 = ssub.s32 256, 256
          %143 = vsyncadd %s136, %s142
          %s144 = smul.addr %s24, 2
          %s145 = sadd.s32 %s140, %s144
          %s146 = smul.addr %s145, 128
          %s147 = scalar_lea.hbm %s0, %s146
          %s148 = sshll.u32 %s139, 4
          %s149 = int_to_ptr.vmem [resolvable:$true] %s148
          %154 = dma.hbm_to_vmem [thread:$0]  %s147, 256, %s149, %s136, 128, 128, 8
        $region20: #{tpu_custom_call.1} parent=15 // pred_fallthru
          _
        // Predicated region
        $region21: #{tpu_custom_call.1} parent=15 // pred_check
          %p155 = pneg %p79
        $region22: #{tpu_custom_call.1} parent=15 // pred_check_branch
          %157 = sbr.rel (%p155) target = $region24
        $region23: #{tpu_custom_call.1} parent=15 // pred_region
          %s158 = sand.u32 %s69, 1
          %s159 = scalar_lea.sflag [#allocation6], %s158
          %s160 = sand.u32 %s69, 1
          %s161 = smul.addr %s160, 16
          %s162 = scalar_lea.vmem [#allocation5], %s161
          %s163 = smul.u32 2, %s25
          %s165 = ssub.s32 256, 256
          %166 = vsyncadd %s159, %s165
          %s167 = smul.addr %s24, 2
          %s168 = sadd.s32 %s163, %s167
          %s169 = smul.addr %s168, 128
          %s170 = scalar_lea.hbm %s1, %s169
          %s171 = sshll.u32 %s162, 4
          %s172 = int_to_ptr.vmem [resolvable:$true] %s171
          %177 = dma.hbm_to_vmem [thread:$0]  %s170, 256, %s172, %s159, 128, 128, 8
        $region24: #{tpu_custom_call.1} parent=15 // pred_fallthru
          _
      $region16: #{tpu_custom_call.1} parent=5 // pred_fallthru
        _
      %p178 = scmp.le.s32.totalorder 1, %s17
      %p179 = scmp.lt.s32.totalorder %s17, 3
      %p180 = pnand %p178, %p179
      %p181 = pneg %p180
      // Predicated region
      $region25: #{tpu_custom_call.1} parent=5 // pred_check
        _
      $region26: #{tpu_custom_call.1} parent=5 // pred_check_branch
        %183 = sbr.rel (%p180) target = $region28
      $region27: #{tpu_custom_call.1} parent=5 // pred_region
        %s184 = ssub.s32 %s17, 1
        %s185 = sand.u32 %s44, 1
        %s186 = scalar_lea.sflag [#allocation3], %s185
        %s187 = sand.u32 %s44, 1
        %s188 = smul.addr %s187, 16
        %s189 = scalar_lea.vmem [#allocation2], %s188
        // Predicated region
        $region29: #{tpu_custom_call.1} parent=27 // pred_check
          %p190 = pneg %p57
        $region30: #{tpu_custom_call.1} parent=27 // pred_check_branch
          %192 = sbr.rel (%p190) target = $region32
        $region31: #{tpu_custom_call.1} parent=27 // pred_region
          %193 = dma.done %s186, 256
        $region32: #{tpu_custom_call.1} parent=27 // pred_fallthru
          _
        %s194 = sand.u32 %s72, 1
        %s195 = scalar_lea.sflag [#allocation6], %s194
        %s196 = sand.u32 %s72, 1
        %s197 = smul.addr %s196, 16
        %s198 = scalar_lea.vmem [#allocation5], %s197
        // Predicated region
        $region33: #{tpu_custom_call.1} parent=27 // pred_check
          %p199 = pneg %p85
        $region34: #{tpu_custom_call.1} parent=27 // pred_check_branch
          %201 = sbr.rel (%p199) target = $region36
        $region35: #{tpu_custom_call.1} parent=27 // pred_region
          %202 = dma.done %s195, 256
        $region36: #{tpu_custom_call.1} parent=27 // pred_fallthru
          _
        %s203 = sand.u32 %s44, 1
        %s204 = scalar_lea.sflag [#allocation3], %s203
        %s205 = sand.u32 %s44, 1
        %s206 = smul.addr %s205, 16
        %s207 = scalar_lea.vmem [#allocation2], %s206
        %p208 = pneg %p57
        %p209 = pneg %p54
        %s210 = sand.u32 %s72, 1
        %s211 = scalar_lea.sflag [#allocation6], %s210
        %s212 = sand.u32 %s72, 1
        %s213 = smul.addr %s212, 16
        %s214 = scalar_lea.vmem [#allocation5], %s213
        %p215 = pneg %p85
        %p216 = pneg %p82
        %p217 = pneg %p113
        %p218 = pneg %p110
        %s219 = sand.u32 %s100, 1
        %s220 = scalar_lea.sflag [#allocation4], %s219
        %s221 = sand.u32 %s100, 1
        %s222 = smul.addr %s221, 8
        %s223 = scalar_lea.vmem [#allocation7], %s222
        %s224 = smul.u32 2, %s27
        %s225 = smul.u32 2, %s27
        %v226 = vld [vmem:[%s189] sm:$0xff]
        %v227 = vld [vmem:[%s189 + $0x8] sm:$0xff]
        %v228 = vld [vmem:[%s198] sm:$0xff]
        %v229 = vld [vmem:[%s198 + $0x8] sm:$0xff]
        %vm230 = vcmp.gt.f32.partialorder %v228, 0.4
        %vm231 = vcmp.gt.f32.partialorder %v229, 0.4
        %vm232 = vcmp.lt.f32.partialorder %v228, 0.6
        %vm233 = vcmp.lt.f32.partialorder %v229, 0.6
        %vm234 = vmand %vm230, %vm232
        %vm235 = vmand %vm231, %vm233
        %vm236 = vcmp.gt.f32.partialorder %v228, 0.9
        %vm237 = vcmp.gt.f32.partialorder %v229, 0.9
        %v238 = vsel %vm234, 1.5, 1.0
        %v239 = vsel %vm235, 1.5, 1.0
        %v240 = vsel %vm236, 2.0, %v238
        %v241 = vsel %vm237, 2.0, %v239
        %v242 = vsub.f32 %v226, %v228
        %v243 = vsub.f32 %v227, %v229
        %v244 = vmul.f32 %v242, %v242
        %v245 = vmul.f32 %v243, %v243
        %v246 = vmul.f32 %v244, %v240
        %v247 = vmul.f32 %v245, %v241
        %vm248 = vcmask 130048
        %v249 = vsel %vm248, %v246, 0.0
        %v250 = vsel %vm248, %v247, 0.0
        %v251 = vadd.f32 %v249, %v250
        %252 = vadd.xlane.f32.xlu0 %v251
        %v253 = vpop.xlane.xlu0 %252
        %v254 = vrot.slane %v253, 4
        %v255 = vadd.f32 %v253, %v254
        %v256 = vrot.slane %v255, 2
        %v257 = vadd.f32 %v255, %v256
        %v258 = vrot.slane %v257, 1
        %v259 = vadd.f32 %v257, %v258
        %s260 = vtos %v259
        %v261 = vlaneseq
        %v262 = vand.u32 %v261, 127
        %vm263 = vcmask 1047680
        %264 = vrot.lane.b32.xlu0 %v226, 16
        %v265 = vpop.permute.xlu0 %264
        %v266 = vsel %vm263, %v265, %v226
        %267 = vrot.lane.b32.xlu0 %v227, 16
        %v268 = vpop.permute.xlu0 %267
        %v269 = vsel %vm263, %v268, %v227
        %270 = vrot.lane.b32.xlu0 %v266, 16
        %v271 = vpop.permute.xlu0 %270
        %272 = vrot.lane.b32.xlu0 %v269, 16
        %v273 = vpop.permute.xlu0 %272
        %v274 = vsel %vm263, %v271, %v226
        %v275 = vsel %vm263, %v273, %v227
        %vm276 = vcmp.lt.s32.totalorder %v262, 15
        %279 = vrot.lane.b32.xlu0 %v226, 1
        %v280 = vpop.permute.xlu0 %279
        %281 = vrot.lane.b32.xlu0 %v227, 1
        %v282 = vpop.permute.xlu0 %281
        %v285 = vsub.f32 %v274, %v280
        %v286 = vsub.f32 %v275, %v282
        %v287 = vand.u32 2147483647, %v285
        %v288 = vand.u32 2147483647, %v286
        %v289 = vsel %vm276, 1, 0
        %vm290 = vcmp.eq.s32.totalorder %v289, 1
        %293 = vrot.lane.b32.xlu0 %v287, 127
        %v294 = vpop.permute.xlu0 %293
        %295 = vrot.lane.b32.xlu0 %v288, 127
        %v296 = vpop.permute.xlu0 %295
        %v299 = vsel %vm290, %v294, 0.0
        %v300 = vsel %vm290, %v296, 0.0
        %v301 = vsel %vm248, %v299, 0.0
        %v302 = vsel %vm248, %v300, 0.0
        %v303 = vadd.f32 %v301, %v302
        %304 = vadd.xlane.f32.xlu0 %v303
        %v305 = vpop.xlane.xlu0 %304
        %v306 = vrot.slane %v305, 4
        %v307 = vadd.f32 %v305, %v306
        %v308 = vrot.slane %v307, 2
        %v309 = vadd.f32 %v307, %v308
        %v310 = vrot.slane %v309, 1
        %v311 = vadd.f32 %v309, %v310
        %s312 = vtos %v311
        %v313 = vlaneseq
        %v314 = vshrl.u32 %v313, 7
        %v315 = vadd.s32 %v314, 8
        %v316 = vrot.slane %v226, 1
        %v317 = vrot.slane %v227, 1
        %vm318 = vcmp.lt.s32.totalorder %v314, 7
        %v319 = vsel %vm318, %v316, %v317
        %v320 = vsel %vm318, %v317, %v316
        %vm321 = vcmp.lt.s32.totalorder %v314, 15
        %vm322 = vcmp.lt.s32.totalorder %v315, 15
        %v323 = vsub.f32 %v319, %v226
        %v324 = vsub.f32 %v320, %v227
        %v325 = vand.u32 2147483647, %v323
        %v326 = vand.u32 2147483647, %v324
        %v327 = vsel %vm321, 1, 0
        %v328 = vsel %vm322, 1, 0
        %vm329 = vcmp.eq.s32.totalorder %v327, 1
        %vm330 = vcmp.eq.s32.totalorder %v328, 1
        %v331 = vsel %vm329, %v325, 0.0
        %v332 = vsel %vm330, %v326, 0.0
        %v333 = vsel %vm248, %v331, 0.0
        %v334 = vsel %vm248, %v332, 0.0
        %v335 = vadd.f32 %v333, %v334
        %336 = vadd.xlane.f32.xlu0 %v335
        %v337 = vpop.xlane.xlu0 %336
        %v338 = vrot.slane %v337, 4
        %v339 = vadd.f32 %v337, %v338
        %v340 = vrot.slane %v339, 2
        %v341 = vadd.f32 %v339, %v340
        %v342 = vrot.slane %v341, 1
        %v343 = vadd.f32 %v341, %v342
        %s344 = vtos %v343
        %vm345 = vcmp.eq.s32.totalorder %v262, 0
        %v346 = vstv %s260
        %v347 = vsel %vm345, %v346, 0.0
        %vm348 = vcmp.eq.s32.totalorder %v262, 1
        %v349 = vstv %s312
        %v350 = vsel %vm348, %v349, %v347
        %vm351 = vcmp.eq.s32.totalorder %v262, 2
        %v352 = vstv %s344
        %v353 = vsel %vm351, %v352, %v350
        %354 = vst [vmem:[%s223] sm:$0xff] %v353
        %s355 = sand.u32 %s100, 1
        %s356 = scalar_lea.sflag [#allocation4], %s355
        %s357 = sand.u32 %s100, 1
        %s358 = smul.addr %s357, 8
        %s359 = scalar_lea.vmem [#allocation7], %s358
        // Predicated region
        $region37: #{tpu_custom_call.1} parent=27 // pred_check
          %p360 = pneg %p110
        $region38: #{tpu_custom_call.1} parent=27 // pred_check_branch
          %362 = sbr.rel (%p360) target = $region40
        $region39: #{tpu_custom_call.1} parent=27 // pred_region
          %s364 = ssub.s32 128, 128
          %365 = vsyncadd %s356, %s364
          %s366 = sadd.s32 %s27, %s26
          %s367 = smul.addr %s366, 128
          %s368 = scalar_lea.hbm %s2, %s367
          %s370 = sshll.u32 %s359, 4
          %s371 = int_to_ptr.vmem [resolvable:$true] %s370
          %373 = dma.vmem_to_hbm [thread:$0]  %s371, 128, %s368, %s356
        $region40: #{tpu_custom_call.1} parent=27 // pred_fallthru
          _
      $region28: #{tpu_custom_call.1} parent=5 // pred_fallthru
        _
      %p374 = scmp.le.s32.totalorder 2, %s17
      // Predicated region
      $region41: #{tpu_custom_call.1} parent=5 // pred_check
        %p375 = pneg %p374
      $region42: #{tpu_custom_call.1} parent=5 // pred_check_branch
        %377 = sbr.rel (%p375) target = $region44
      $region43: #{tpu_custom_call.1} parent=5 // pred_region
        %s378 = ssub.s32 %s17, 2
        // Predicated region
        $region45: #{tpu_custom_call.1} parent=43 // pred_check
          %p379 = pneg %p116
        $region46: #{tpu_custom_call.1} parent=43 // pred_check_branch
          %381 = sbr.rel (%p379) target = $region48
        $region47: #{tpu_custom_call.1} parent=43 // pred_region
          %s382 = sand.u32 %s101, 1
          %s383 = scalar_lea.sflag [#allocation4], %s382
          %s384 = sand.u32 %s101, 1
          %s385 = smul.addr %s384, 8
          %s386 = scalar_lea.vmem [#allocation7], %s385
          %387 = dma.done %s383, 128
        $region48: #{tpu_custom_call.1} parent=43 // pred_fallthru
          _
      $region44: #{tpu_custom_call.1} parent=5 // pred_fallthru
        _
    $region6: #{tpu_custom_call.1} parent=1 // loop_footer
      %s21 = sadd.s32 1, %s17
    $region7: #{tpu_custom_call.1} parent=1 // loop_footer_branch
      %16 = sbr.rel target = $region3
    $region8: #{tpu_custom_call.1} parent=1 // loop_exit
      _
    %388 = vsyncpa [#allocation3], 1
    %s389 = scalar_lea.sflag [#allocation3], 1
    %390 = vsyncpa %s389, 1
    %391 = vsyncpa [#allocation6], 1
    %s392 = scalar_lea.sflag [#allocation6], 1
    %393 = vsyncpa %s392, 1
    %394 = vsyncpa [#allocation4], 1
    %s395 = scalar_lea.sflag [#allocation4], 1
    %396 = vsyncpa %s395, 1

</llo_original>
